<compile_context>
chip_gen: v6e
topology: v6e:2x2x1
jax: 0.10.0
libtpu: 0.0.40
codegen_flags: <defaults>
</compile_context>

<pallas_src>
import math

import jax
import jax.numpy as jnp
from jax import lax
from jax.experimental import pallas as pl
from jax.experimental.pallas import tpu as pltpu


def _round_up(v, m):
    return ((v + m - 1) // m) * m


def _default_vmem_budget():
    """Per-TensorCore VMEM budget with headroom for compiler-internal scratch."""
    phys = None
    try:
        info = pltpu.get_tpu_info()
        phys = getattr(info, "vmem_capacity_bytes", None)
    except Exception:
        phys = None
    if not phys or phys <= 0:
        phys = 64 * 1024 * 1024  # conservative fallback: v7x physical VMEM / TC
    return int(phys) * 3 // 4    # leave ~25% headroom


# --------------------------------------------------------------------------- #
# Kernels
# --------------------------------------------------------------------------- #
def _single_bias_kernel(x_ref, w_ref, b_ref, o_ref):
    # Single K step: full contraction in one MXU call, bias add, store.
    acc = jnp.dot(x_ref[...], w_ref[...], preferred_element_type=jnp.float32)
    o_ref[...] = (acc + b_ref[...]).astype(o_ref.dtype)


def _single_nobias_kernel(x_ref, w_ref, o_ref):
    o_ref[...] = jnp.dot(
        x_ref[...], w_ref[...], preferred_element_type=jnp.float32
    ).astype(o_ref.dtype)


def _kloop_direct_bias(x_ref, w_ref, b_ref, o_ref):
    # f32 output block is resident across the (innermost) K axis: accumulate
    # into it directly, no VMEM scratch, no final copy/cast.
    k = pl.program_id(2)

    @pl.when(k == 0)
    def _():
        o_ref[...] = jnp.zeros_like(o_ref)

    o_ref[...] += jnp.dot(x_ref[...], w_ref[...], preferred_element_type=jnp.float32)

    @pl.when(k == pl.num_programs(2) - 1)
    def _():
        o_ref[...] += b_ref[...]


def _kloop_direct_nobias(x_ref, w_ref, o_ref):
    k = pl.program_id(2)

    @pl.when(k == 0)
    def _():
        o_ref[...] = jnp.zeros_like(o_ref)

    o_ref[...] += jnp.dot(x_ref[...], w_ref[...], preferred_element_type=jnp.float32)


def _kloop_scratch_bias(x_ref, w_ref, b_ref, o_ref, acc_ref):
    # Low-precision output: keep an f32 accumulator, cast once at the end.
    k = pl.program_id(2)

    @pl.when(k == 0)
    def _():
        acc_ref[...] = jnp.zeros_like(acc_ref)

    acc_ref[...] += jnp.dot(x_ref[...], w_ref[...], preferred_element_type=jnp.float32)

    @pl.when(k == pl.num_programs(2) - 1)
    def _():
        o_ref[...] = (acc_ref[...] + b_ref[...]).astype(o_ref.dtype)


def _kloop_scratch_nobias(x_ref, w_ref, o_ref, acc_ref):
    k = pl.program_id(2)

    @pl.when(k == 0)
    def _():
        acc_ref[...] = jnp.zeros_like(acc_ref)

    acc_ref[...] += jnp.dot(x_ref[...], w_ref[...], preferred_element_type=jnp.float32)

    @pl.when(k == pl.num_programs(2) - 1)
    def _():
        o_ref[...] = acc_ref[...].astype(o_ref.dtype)


# --------------------------------------------------------------------------- #
# One-time parameter preparation (amortized across calls)
# --------------------------------------------------------------------------- #
def prepare_linear_params(weight, bias=None, *, tn=1024, tk=1024,
                          compute_dtype=None, vmem_budget_bytes=None):
    """Transpose the PyTorch (out_dim, in_dim) weight to (in_dim, out_dim),
    zero-pad to tile multiples, and (optionally) cast to the compute dtype —
    ONCE, at parameter-load time, not per forward call."""
    out_dim, in_dim = weight.shape
    if vmem_budget_bytes is None:
        vmem_budget_bytes = _default_vmem_budget()

    w_dtype = compute_dtype if compute_dtype is not None else weight.dtype
    w_bytes = jnp.dtype(w_dtype).itemsize

    k_full = _round_up(in_dim, 128)
    n_full = _round_up(out_dim, 128)

    tk_req = min(_round_up(max(tk, 128), 128), k_full)
    tn_req = min(_round_up(max(tn, 128), 128), n_full)

    # Small-layer fast path: whole padded weight resident in VMEM (grid collapses
    # to (M tiles, 1); weight/bias DMA'd once). Only if the requested tiles don't
    # ask for something smaller (lets tests / callers force the tiled path).
    resident_ok = 2 * k_full * n_full * w_bytes <= vmem_budget_bytes // 3
    if resident_ok and tk_req >= k_full and tn_req >= n_full:
        tk_, tn_ = k_full, n_full
    else:
        tk_, tn_ = tk_req, tn_req
        # Keep the (double-buffered) weight tile to at most ~1/3 of the budget,
        # leaving room for the x / out tiles and accumulator.
        while 2 * tk_ * tn_ * w_bytes > vmem_budget_bytes // 3 and max(tk_, tn_) > 128:
            if tk_ >= tn_ and tk_ > 128:
                tk_ = _round_up(tk_ // 2, 128)
            else:
                tn_ = _round_up(tn_ // 2, 128)

    k_pad = _round_up(in_dim, tk_)
    n_pad = _round_up(out_dim, tn_)

    wT = jnp.asarray(weight).T.astype(w_dtype)          # (in_dim, out_dim)
    if (k_pad, n_pad) != (in_dim, out_dim):
        wT = jnp.pad(wT, ((0, k_pad - in_dim), (0, n_pad - out_dim)))

    b_p = None
    if bias is not None:
        b_p = jnp.asarray(bias).astype(jnp.float32).reshape(1, out_dim)
        if n_pad != out_dim:
            b_p = jnp.pad(b_p, ((0, 0), (0, n_pad - out_dim)))

    return {
        "wT": wT, "bias": b_p,
        "in_dim": in_dim, "out_dim": out_dim,
        "tk": tk_, "tn": tn_, "k_pad": k_pad, "n_pad": n_pad,
        "compute_dtype": compute_dtype,
        "vmem_budget": int(vmem_budget_bytes),
    }


# --------------------------------------------------------------------------- #
# Forward pass
# --------------------------------------------------------------------------- #
def linear_norm(x, params, *, tm=512):
    """y = x @ weight.T + bias with pre-prepared params (PyTorch Linear fwd)."""
    in_dim, out_dim = params["in_dim"], params["out_dim"]
    tk, tn = params["tk"], params["tn"]
    k_pad, n_pad = params["k_pad"], params["n_pad"]
    wT, b_p = params["wT"], params["bias"]
    budget = params["vmem_budget"]
    cdt = params["compute_dtype"]

    *lead, xk = x.shape
    assert xk == in_dim, f"expected last dim {in_dim}, got {xk}"
    m = 1
    for d in lead:
        m *= d

    out_dtype = x.dtype
    x2 = x.reshape(m, in_dim)
    if cdt is not None:
        x2 = x2.astype(cdt)

    x_bytes = x2.dtype.itemsize
    w_bytes = wT.dtype.itemsize
    out_bytes = jnp.dtype(out_dtype).itemsize
    has_bias = b_p is not None
    nk = k_pad // tk

    # Sublane alignment for the activation tile (8 for f32, 16 for bf16, ...).
    sub = max(8, 32 // max(1, x_bytes))

    # ---- Per-call tm: aligned, clamped to problem, shrunk to fit VMEM budget.
    tm_ = _round_up(max(sub, min(tm, _round_up(m, sub))), sub)

    def _need(tm__):
        n = (2 * tm__ * tk * x_bytes          # x tile, double buffered
             + 2 * tk * tn * w_bytes          # W tile, double buffered
             + 2 * tm__ * tn * out_bytes)     # out tile, double buffered
        if nk > 1 and out_dtype != jnp.float32:
            n += tm__ * tn * 4                # f32 accumulator scratch
        if has_bias:
            n += 2 * tn * 4                   # bias tile
        return n

    while _need(tm_) > budget and tm_ > sub:
        tm_ = _round_up(max(sub, tm_ // 2), sub)

    # v7x megacore: make sure the parallel (i, j) grid has >= 2 blocks when the
    # problem is big enough to split.
    m_pad = _round_up(m, tm_)
    if (m_pad // tm_) * (n_pad // tn) == 1 and tm_ >= 2 * sub:
        tm_ = _round_up(tm_ // 2, sub)
        m_pad = _round_up(m, tm_)

    # ---- Pad only x per call (M to the tile multiple, K to the prepared k_pad;
    #      zero K padding is a mathematical no-op against the zero-padded W).
    if (m_pad, k_pad) != (m, in_dim):
        x2 = jnp.pad(x2, ((0, m_pad - m), (0, k_pad - in_dim)))

    vmem_limit = int(min(budget, max(32 * 1024 * 1024, _need(tm_) + (8 << 20))))

    if nk == 1:
        # Single K step (covers the resident-weight fast path): 2-D all-parallel
        # grid, no accumulator, weight/bias blocks constant along i.
        grid = (m_pad // tm_, n_pad // tn)
        in_specs = [
            pl.BlockSpec((tm_, tk), lambda i, j: (i, 0)),   # x tile
            pl.BlockSpec((tk, tn), lambda i, j: (0, j)),    # W tile (in, out)
        ]
        if has_bias:
            in_specs.append(pl.BlockSpec((1, tn), lambda i, j: (0, j)))
        out_spec = pl.BlockSpec((tm_, tn), lambda i, j: (i, j))
        scratch = []
        kernel = _single_bias_kernel if has_bias else _single_nobias_kernel
        dims = ("parallel", "parallel")
    else:
        grid = (m_pad // tm_, n_pad // tn, nk)
        in_specs = [
            pl.BlockSpec((tm_, tk), lambda i, j, k: (i, k)),  # x tile
            pl.BlockSpec((tk, tn), lambda i, j, k: (k, j)),   # W tile (in, out)
        ]
        if has_bias:
            in_specs.append(pl.BlockSpec((1, tn), lambda i, j, k: (0, j)))
        out_spec = pl.BlockSpec((tm_, tn), lambda i, j, k: (i, j))
        dims = ("parallel", "parallel", "arbitrary")
        if out_dtype == jnp.float32:
            scratch = []   # accumulate directly into the resident f32 output
            kernel = _kloop_direct_bias if has_bias else _kloop_direct_nobias
        else:
            scratch = [pltpu.VMEM((tm_, tn), jnp.float32)]
            kernel = _kloop_scratch_bias if has_bias else _kloop_scratch_nobias

    args = (x2, wT) + ((b_p,) if has_bias else ())

    y2 = pl.pallas_call(
        kernel,
        out_shape=jax.ShapeDtypeStruct((m_pad, n_pad), out_dtype),
        grid_spec=pltpu.PrefetchScalarGridSpec(
            num_scalar_prefetch=0,
            grid=grid,
            in_specs=in_specs,
            out_specs=out_spec,
            scratch_shapes=scratch,
        ),
        compiler_params=pltpu.CompilerParams(
            dimension_semantics=dims,
            vmem_limit_bytes=vmem_limit,
        ),
    )(*args)

    y = y2[:m, :out_dim]
    return y.reshape(*lead, out_dim)


def linear_norm_torch(x, weight, bias=None, **kwargs):
    """One-shot convenience matching the PyTorch module forward exactly:
    y = x @ weight.T + bias, weight in (out_dim, in_dim) layout. Prefer calling
    prepare_linear_params() once and linear_norm() per step in real use."""
    tm = kwargs.pop("tm", 512)
    params = prepare_linear_params(weight, bias, **kwargs)
    return linear_norm(x, params, tm=tm)


def init_linear_norm_params(key, in_dim, out_dim, w_init_gain="linear"):
    """xavier_uniform_ weight (gain = calculate_gain(w_init_gain)) + default
    torch.nn.Linear bias init, matching the PyTorch module."""
    gain = 1.0  # calculate_gain('linear') == 1.0
    bound_w = gain * math.sqrt(6.0 / (in_dim + out_dim))
    k_w, k_b = jax.random.split(key)
    weight = jax.random.uniform(
        k_w, (out_dim, in_dim), minval=-bound_w, maxval=bound_w, dtype=jnp.float32
    )
    bound_b = 1.0 / math.sqrt(in_dim)
    bias = jax.random.uniform(
        k_b, (out_dim,), minval=-bound_b, maxval=bound_b, dtype=jnp.float32
    )
    return weight, bias


if __name__ == "__main__":
    key = jax.random.PRNGKey(0)
    k_x1, k_p1, k_x2, k_p2, k_x3, k_p3, k_x4 = jax.random.split(key, 7)

    # --- 1) Typical LinearNorm use: small layer, f32, bias. Hits the
    #        resident-weight fast path (single K step, weight DMA'd once).
    batch, seq, in_dim, out_dim = 2, 8, 32, 32
    x = jax.random.normal(k_x1, (batch, seq, in_dim), dtype=jnp.float32)
    weight, bias = init_linear_norm_params(k_p1, in_dim, out_dim)
    params = prepare_linear_params(weight, bias)      # one-time weight prep
    y = linear_norm(x, params)
    jax.block_until_ready(y)
    y_ref = jnp.einsum("bsi,oi->bso", x, weight,
                       precision=lax.Precision.HIGHEST) + bias
    assert y.shape == (batch, seq, out_dim)
    assert jnp.allclose(y, y_ref, atol=1e-4, rtol=1e-4), "mismatch (fast path)"

    # --- 2) Larger layer with forced small tiles so every grid axis has >1 step
    #        (exercises the K-loop path with direct f32 accumulation into o_ref).
    b2, s2, in2, out2 = 4, 64, 384, 256
    x_big = jax.random.normal(k_x2, (b2, s2, in2), dtype=jnp.float32)
    w_big, bias_big = init_linear_norm_params(k_p2, in2, out2)
    params_big = prepare_linear_params(w_big, bias_big, tn=128, tk=128)
    y_big = linear_norm(x_big, params_big, tm=64)
    jax.block_until_ready(y_big)
    y_big_ref = jnp.einsum("bsi,oi->bso", x_big, w_big,
                           precision=lax.Precision.HIGHEST) + bias_big
    assert y_big.shape == (b2, s2, out2)
    assert jnp.allclose(y_big, y_big_ref, atol=2e-3, rtol=1e-3), "mismatch (tiled f32)"

    # --- 3) bias=False specialization (LinearNorm(bias=False)), non-square dims.
    in3, out3 = 32, 48
    x3 = jax.random.normal(k_x3, (batch, seq, in3), dtype=jnp.float32)
    w3, _ = init_linear_norm_params(k_p3, in3, out3)
    params3 = prepare_linear_params(w3, None)
    y3 = linear_norm(x3, params3)
    jax.block_until_ready(y3)
    y3_ref = jnp.einsum("bsi,oi->bso", x3, w3, precision=lax.Precision.HIGHEST)
    assert y3.shape == (batch, seq, out3)
    assert jnp.allclose(y3, y3_ref, atol=1e-4, rtol=1e-4), "mismatch (no bias)"

    # --- 4) Optional bf16 compute path with multi-K tiles (exercises the
    #        f32-scratch accumulator epilogue for low-precision outputs).
    x4 = jax.random.normal(k_x4, (2, 16, in2), dtype=jnp.float32).astype(jnp.bfloat16)
    params4 = prepare_linear_params(w_big, bias_big, tn=128, tk=128,
                                    compute_dtype=jnp.bfloat16)
    y4 = linear_norm(x4, params4, tm=16)
    jax.block_until_ready(y4)
    x4_f = x4.astype(jnp.float32)
    w4_f = w_big.astype(jnp.bfloat16).astype(jnp.float32)
    y4_ref = jnp.einsum("bsi,oi->bso", x4_f, w4_f,
                        precision=lax.Precision.HIGHEST) + bias_big
    assert y4.shape == (2, 16, out2)
    assert jnp.allclose(y4.astype(jnp.float32), y4_ref, atol=6e-2, rtol=6e-2), \
        "mismatch (bf16 path)"

    print("KERNEL_OK")
</pallas_src>

<mosaic_0001>
module attributes {stable_mosaic.version = 11 : i64} {
  func.func @_single_bias_kernel(%arg0: i32, %arg1: i32, %arg2: memref<8x128xf32, #tpu.memory_space<vmem>>, %arg3: memref<128x128xf32, #tpu.memory_space<vmem>>, %arg4: memref<1x128xf32, #tpu.memory_space<vmem>>, %arg5: memref<8x128xf32, #tpu.memory_space<vmem>>) attributes {dimension_semantics = [#tpu.dimension_semantics<parallel>, #tpu.dimension_semantics<parallel>], iteration_bounds = array<i64: 2, 1>, scalar_prefetch = 0 : i64, scratch_operands = 0 : i64, tpu.core_type = #tpu.core_type<tc>, window_params = [{transform_indices = @transform_0, window_bounds = array<i64: 8, 128>}, {transform_indices = @transform_1, window_bounds = array<i64: 128, 128>}, {transform_indices = @transform_2, window_bounds = array<i64: 1, 128>}, {transform_indices = @transform_3, window_bounds = array<i64: 8, 128>}]} {
    %c0 = arith.constant 0 : index
    %c0_0 = arith.constant 0 : index
    %0 = vector.load %arg2[%c0, %c0_0] : memref<8x128xf32, #tpu.memory_space<vmem>>, vector<8x128xf32>
    %c0_1 = arith.constant 0 : index
    %c0_2 = arith.constant 0 : index
    %1 = vector.load %arg3[%c0_1, %c0_2] : memref<128x128xf32, #tpu.memory_space<vmem>>, vector<128x128xf32>
    %cst = arith.constant dense<0.000000e+00> : vector<8x128xf32>
    %2 = tpu.matmul %0, %1, %cst {dimension_numbers = #tpu.dot_dimension_numbers<[1], [0], [0], [1], [0, 0, 1, 1], [], []>} : vector<8x128xf32>, vector<128x128xf32>, vector<8x128xf32> -> vector<8x128xf32>
    %c0_3 = arith.constant 0 : index
    %c0_4 = arith.constant 0 : index
    %3 = vector.load %arg4[%c0_3, %c0_4] : memref<1x128xf32, #tpu.memory_space<vmem>>, vector<1x128xf32>
    %4 = vector.broadcast %3 : vector<1x128xf32> to vector<8x128xf32>
    %5 = arith.addf %2, %4 : vector<8x128xf32>
    %c0_5 = arith.constant 0 : index
    %c0_6 = arith.constant 0 : index
    %6 = vector.load %arg5[%c0_5, %c0_6] : memref<8x128xf32, #tpu.memory_space<vmem>>, vector<8x128xf32>
    tpu.vector_store %arg5[%c0_5, %c0_6], %5 {strides = array<i32>} : memref<8x128xf32, #tpu.memory_space<vmem>>, vector<8x128xf32>,
    return
  }
  func.func @transform_0(%arg0: i32, %arg1: i32) -> (i32, i32) {
    %c0_i32 = arith.constant 0 : i32
    %c0_i32_0 = arith.constant 0 : i32
    return %arg0, %c0_i32 : i32, i32
  }
  func.func @transform_1(%arg0: i32, %arg1: i32) -> (i32, i32) {
    %c0_i32 = arith.constant 0 : i32
    %c0_i32_0 = arith.constant 0 : i32
    return %c0_i32, %arg1 : i32, i32
  }
  func.func @transform_2(%arg0: i32, %arg1: i32) -> (i32, i32) {
    %c0_i32 = arith.constant 0 : i32
    %c0_i32_0 = arith.constant 0 : i32
    return %c0_i32, %arg1 : i32, i32
  }
  func.func @transform_3(%arg0: i32, %arg1: i32) -> (i32, i32) {
    %c0_i32 = arith.constant 0 : i32
    return %arg0, %arg1 : i32, i32
  }
}

</mosaic_0001>

<llo_original>
// kernel: tpu_custom_call.1
$region0: #{tpu_custom_call.1}
  #allocation0 [shape = 'u32[]', space=smem, size = 0x4, offset = 0x4, fixed_abs, tag = 'smem constant byte address 0x4 - core index']
  #allocation1 [shape = 'u32[144,128]{1,0:T(1,128)}', space=vmem, size = 0x12000, scoped, tag = 'internal scratch']
  %s0 = inlined_call_operand.hbm [shape: f32[16,128], index: 0, kind: input, shape index: {}]
  %s1 = inlined_call_operand.hbm [shape: f32[128,128], index: 1, kind: input, shape index: {}]
  %s2 = inlined_call_operand.vmem [shape: f32[1,128], index: 2, kind: input, shape index: {}]
  %s3 = inlined_call_operand.hbm [shape: f32[16,128], index: 3, kind: output, shape index: {}]
  %s4 = sld [smem:[#allocation0]]
  $region53: #{tpu_custom_call.1} parent=0
    _
  %s6 = ssub.s32 1, %s4
  %s7 = scalar_select 0, %s6, %s4
  $region1: #{tpu_custom_call.1} parent=0
    #allocation2 [shape = 'u8[8192]{0}', space=vmem, size = 0x2000, scoped, tag = 'input window, operand 0']
    #allocation3 [shape = 's32[2]{0}', space=sflag, size = 0x8, scoped, tag = 'scoped memory for tpu_custom_call.1']
    #allocation4 [shape = 's32[2]{0}', space=sflag, size = 0x8, scoped, tag = 'scoped memory for tpu_custom_call.1']
    #allocation5 [shape = 'u8[65536]{0}', space=vmem, size = 0x10000, scoped, tag = 'input window, operand 1, single buffered']
    #allocation6 [shape = 's32[1]{0}', space=sflag, size = 0x4, scoped, tag = 'scoped memory for tpu_custom_call.1']
    #allocation7 [shape = 'u8[8192]{0}', space=vmem, size = 0x2000, scoped, tag = 'output window, operand 0']
    %8 = vsyncpa [#allocation3], 0
    %s9 = scalar_lea.sflag [#allocation3], 1
    %10 = vsyncpa %s9, 0
    %11 = vsyncpa [#allocation6], 0
    %12 = vsyncpa [#allocation4], 0
    %s13 = scalar_lea.sflag [#allocation4], 1
    %14 = vsyncpa %s13, 0
    loop: start=0, step=1, limit=4
    $region2: #{tpu_custom_call.1} parent=1 // loop_pre_header
      _
    $region3: #{tpu_custom_call.1} parent=1 // loop_header
      %s16 = sphi 0, %s20
      %p17 = scmp.ge.s32.totalorder %s16, 4
      %s23 = sphi 0, %s35
      %s24 = sphi 0, %s31
      %s25 = sphi 0, %s23
      %s26 = sphi 0, %s24
      %s27 = sphi 0, %s25
      %s28 = sphi 0, %s26
      %s38 = sphi 0, %s40
      %s41 = sphi 0, %s38
      %s42 = sphi 0, %s41
      %s58 = sphi 0, %s42
      %s64 = sphi 0, %s66
      %s67 = sphi 0, %s64
      %s68 = sphi 0, %s67
      %s84 = sphi 0, %s68
      %s90 = sphi 0, %s92
      %s93 = sphi 0, %s90
      %s94 = sphi 0, %s93
      %s110 = sphi 0, %s94
      %s118 = sphi 0, %s120
      %s121 = sphi 0, %s118
      %s122 = sphi 0, %s121
      %s138 = sphi 0, %s122
    $region4: #{tpu_custom_call.1} parent=1 // loop_header_branch
      %19 = sbr.rel (%p17) target = $region8
    $region5: #{tpu_custom_call.1} parent=1 // loop_body
      %s21 = ssub.s32 %s16, 1
      %s22 = ssub.s32 %s16, 2
      %s29 = sadd.s32 1, %s24
      %p30 = scmp.ge.s32.totalorder %s29, 1
      %s31 = scalar_select %p30, 0, %s29
      %s32 = sadd.s32 1, %s23
      %s33 = scalar_select %p30, %s32, %s23
      %p34 = scmp.ge.s32.totalorder %s33, 2
      %s35 = scalar_select %p34, 0, %s33
      %s36 = ssub.s32 %s23, %s35
      %p37 = scmp.eq.s32.totalorder %s36, 0
      %s39 = sadd.s32 %s38, 1
      %s40 = scalar_select %p37, %s38, %s39
      %p43 = pneg %p37
      %p44 = scmp.eq.s32.totalorder %s16, 1
      %p45 = por %p43, %p44
      %p46 = scmp.ne.s32.totalorder %s38, %s41
      %p47 = scmp.eq.s32.totalorder %s16, 0
      %p48 = por %p46, %p47
      %p49 = scmp.ne.s32.totalorder %s38, %s41
      %p50 = scmp.eq.s32.totalorder %s21, 1
      %p51 = por %p49, %p50
      %p52 = scmp.ne.s32.totalorder %s41, %s42
      %p53 = scmp.eq.s32.totalorder %s21, 0
      %p54 = por %p52, %p53
      %p55 = scmp.ne.s32.totalorder %s41, %s42
      %p56 = scmp.eq.s32.totalorder %s22, 1
      %p57 = por %p55, %p56
      %p59 = scmp.ne.s32.totalorder %s42, %s58
      %p60 = scmp.eq.s32.totalorder %s22, 0
      %p61 = por %p59, %p60
      %s62 = ssub.s32 %s24, %s31
      %p63 = scmp.eq.s32.totalorder %s62, 0
      %s65 = sadd.s32 %s64, 1
      %s66 = scalar_select %p63, %s64, %s65
      %p69 = pneg %p63
      %p70 = scmp.eq.s32.totalorder %s16, 1
      %p71 = por %p69, %p70
      %p72 = scmp.ne.s32.totalorder %s64, %s67
      %p73 = scmp.eq.s32.totalorder %s16, 0
      %p74 = por %p72, %p73
      %p75 = scmp.ne.s32.totalorder %s64, %s67
      %p76 = scmp.eq.s32.totalorder %s21, 1
      %p77 = por %p75, %p76
      %p78 = scmp.ne.s32.totalorder %s67, %s68
      %p79 = scmp.eq.s32.totalorder %s21, 0
      %p80 = por %p78, %p79
      %p81 = scmp.ne.s32.totalorder %s67, %s68
      %p82 = scmp.eq.s32.totalorder %s22, 1
      %p83 = por %p81, %p82
      %p85 = scmp.ne.s32.totalorder %s68, %s84
      %p86 = scmp.eq.s32.totalorder %s22, 0
      %p87 = por %p85, %p86
      %s88 = ssub.s32 %s24, %s31
      %p89 = scmp.eq.s32.totalorder %s88, 0
      %s91 = sadd.s32 %s90, 1
      %s92 = scalar_select %p89, %s90, %s91
      %p95 = pneg %p89
      %p96 = scmp.eq.s32.totalorder %s16, 1
      %p97 = por %p95, %p96
      %p98 = scmp.ne.s32.totalorder %s90, %s93
      %p99 = scmp.eq.s32.totalorder %s16, 0
      %p100 = por %p98, %p99
      %p101 = scmp.ne.s32.totalorder %s90, %s93
      %p102 = scmp.eq.s32.totalorder %s21, 1
      %p103 = por %p101, %p102
      %p104 = scmp.ne.s32.totalorder %s93, %s94
      %p105 = scmp.eq.s32.totalorder %s21, 0
      %p106 = por %p104, %p105
      %p107 = scmp.ne.s32.totalorder %s93, %s94
      %p108 = scmp.eq.s32.totalorder %s22, 1
      %p109 = por %p107, %p108
      %p111 = scmp.ne.s32.totalorder %s94, %s110
      %p112 = scmp.eq.s32.totalorder %s22, 0
      %p113 = por %p111, %p112
      %s114 = ssub.s32 %s23, %s35
      %s115 = ssub.s32 %s24, %s31
      %s116 = sor.u32 %s114, %s115
      %p117 = scmp.eq.s32.totalorder %s116, 0
      %s119 = sadd.s32 %s118, 1
      %s120 = scalar_select %p117, %s118, %s119
      %p123 = pneg %p117
      %p124 = scmp.eq.s32.totalorder %s16, 1
      %p125 = por %p123, %p124
      %p126 = scmp.ne.s32.totalorder %s118, %s121
      %p127 = scmp.eq.s32.totalorder %s16, 0
      %p128 = por %p126, %p127
      %p129 = scmp.ne.s32.totalorder %s118, %s121
      %p130 = scmp.eq.s32.totalorder %s21, 1
      %p131 = por %p129, %p130
      %p132 = scmp.ne.s32.totalorder %s121, %s122
      %p133 = scmp.eq.s32.totalorder %s21, 0
      %p134 = por %p132, %p133
      %p135 = scmp.ne.s32.totalorder %s121, %s122
      %p136 = scmp.eq.s32.totalorder %s22, 1
      %p137 = por %p135, %p136
      %p139 = scmp.ne.s32.totalorder %s122, %s138
      %p140 = scmp.eq.s32.totalorder %s22, 0
      %p141 = por %p139, %p140
      %p142 = scmp.le.s32.totalorder 1, %s16
      %p143 = scmp.lt.s32.totalorder %s16, 3
      %p144 = pnand %p142, %p143
      %p145 = pneg %p144
      // Predicated region
      $region9: #{tpu_custom_call.1} parent=5 // pred_check
        _
      $region10: #{tpu_custom_call.1} parent=5 // pred_check_branch
        %147 = sbr.rel (%p144) target = $region12
      $region11: #{tpu_custom_call.1} parent=5 // pred_region
        %s148 = ssub.s32 %s16, 1
        // Predicated region
        $region13: #{tpu_custom_call.1} parent=11 // pred_check
          %p149 = pneg %p80
        $region14: #{tpu_custom_call.1} parent=11 // pred_check_branch
          %151 = sbr.rel (%p149) target = $region16
        $region15: #{tpu_custom_call.1} parent=11 // pred_region
          %s153 = ssub.s32 2048, 2048
          %154 = vsyncadd [#allocation6], %s153
          %s155 = smul.addr %s26, 128
          %s156 = scalar_lea.hbm %s1, %s155
          %s157 = sshll.u32 [#allocation5], 4
          %s158 = int_to_ptr.vmem [resolvable:$true] %s157
          %163 = dma.hbm_to_vmem [thread:$0]  %s156, 2048, %s158, [#allocation6], 128, 128, 8
        $region16: #{tpu_custom_call.1} parent=11 // pred_fallthru
          _
        // Predicated region
        $region17: #{tpu_custom_call.1} parent=11 // pred_check
          %p164 = pneg %p106
        $region18: #{tpu_custom_call.1} parent=11 // pred_check_branch
          %166 = sbr.rel (%p164) target = $region20
        $region19: #{tpu_custom_call.1} parent=11 // pred_region
          %p167 = scmp.lt.s32.totalorder %s26, 0
          %s168 = scalar_select %p167, %s26, 0
          %s169 = scalar_lea.vmem %s2, %s168
        $region20: #{tpu_custom_call.1} parent=11 // pred_fallthru
          _
      $region12: #{tpu_custom_call.1} parent=5 // pred_fallthru
        _
      %p170 = scmp.lt.s32.totalorder %s16, 2
      // Predicated region
      $region21: #{tpu_custom_call.1} parent=5 // pred_check
        %p171 = pneg %p170
      $region22: #{tpu_custom_call.1} parent=5 // pred_check_branch
        %173 = sbr.rel (%p171) target = $region24
      $region23: #{tpu_custom_call.1} parent=5 // pred_region
        // Predicated region
        $region25: #{tpu_custom_call.1} parent=23 // pred_check
          %p174 = pneg %p48
        $region26: #{tpu_custom_call.1} parent=23 // pred_check_branch
          %176 = sbr.rel (%p174) target = $region28
        $region27: #{tpu_custom_call.1} parent=23 // pred_region
          %s177 = sand.u32 %s38, 1
          %s178 = scalar_lea.sflag [#allocation3], %s177
          %s179 = sand.u32 %s38, 1
          %s180 = smul.addr %s179, 8
          %s181 = scalar_lea.vmem [#allocation2], %s180
          %s183 = ssub.s32 128, 128
          %184 = vsyncadd %s178, %s183
          %s185 = smul.addr %s23, 128
          %s186 = scalar_lea.hbm %s0, %s185
          %s188 = sshll.u32 %s181, 4
          %s189 = int_to_ptr.vmem [resolvable:$true] %s188
          %191 = dma.hbm_to_vmem [thread:$0]  %s186, 128, %s189, %s178
        $region28: #{tpu_custom_call.1} parent=23 // pred_fallthru
          _
      $region24: #{tpu_custom_call.1} parent=5 // pred_fallthru
        _
      %p192 = scmp.le.s32.totalorder 1, %s16
      %p193 = scmp.lt.s32.totalorder %s16, 3
      %p194 = pnand %p192, %p193
      %p195 = pneg %p194
      // Predicated region
      $region29: #{tpu_custom_call.1} parent=5 // pred_check
        _
      $region30: #{tpu_custom_call.1} parent=5 // pred_check_branch
        %197 = sbr.rel (%p194) target = $region32
      $region31: #{tpu_custom_call.1} parent=5 // pred_region
        %s198 = ssub.s32 %s16, 1
        %s199 = sand.u32 %s41, 1
        %s200 = scalar_lea.sflag [#allocation3], %s199
        %s201 = sand.u32 %s41, 1
        %s202 = smul.addr %s201, 8
        %s203 = scalar_lea.vmem [#allocation2], %s202
        // Predicated region
        $region33: #{tpu_custom_call.1} parent=31 // pred_check
          %p204 = pneg %p54
        $region34: #{tpu_custom_call.1} parent=31 // pred_check_branch
          %206 = sbr.rel (%p204) target = $region36
        $region35: #{tpu_custom_call.1} parent=31 // pred_region
          %207 = dma.done %s200, 128
        $region36: #{tpu_custom_call.1} parent=31 // pred_fallthru
          _
        // Predicated region
        $region37: #{tpu_custom_call.1} parent=31 // pred_check
          %p208 = pneg %p80
        $region38: #{tpu_custom_call.1} parent=31 // pred_check_branch
          %210 = sbr.rel (%p208) target = $region40
        $region39: #{tpu_custom_call.1} parent=31 // pred_region
          %211 = dma.done [#allocation6], 2048
        $region40: #{tpu_custom_call.1} parent=31 // pred_fallthru
          _
        %s212 = sand.u32 %s41, 1
        %s213 = scalar_lea.sflag [#allocation3], %s212
        %s214 = sand.u32 %s41, 1
        %s215 = smul.addr %s214, 8
        %s216 = scalar_lea.vmem [#allocation2], %s215
        %p217 = pneg %p54
        %p218 = pneg %p51
        %p219 = pneg %p80
        %p220 = pneg %p77
        %p221 = scmp.lt.s32.totalorder %s26, 0
        %s222 = scalar_select %p221, %s26, 0
        %s223 = scalar_lea.vmem %s2, %s222
        %p224 = pneg %p106
        %p225 = pneg %p103
        %p226 = pneg %p134
        %p227 = pneg %p131
        %s228 = sand.u32 %s121, 1
        %s229 = scalar_lea.sflag [#allocation4], %s228
        %s230 = sand.u32 %s121, 1
        %s231 = smul.addr %s230, 8
        %s232 = scalar_lea.vmem [#allocation7], %s231
        %p233 = scmp.lt.s32.totalorder %s26, 0
        %s234 = scalar_select %p233, %s26, 0
        %s235 = scalar_lea.vmem %s2, %s234
        %v236 = vld [vmem:[%s203] sm:$0xff]
        %v237 = vld [vmem:[#allocation5] sm:$0xff]
        %v238 = vld [vmem:[#allocation5 + $0x8] sm:$0xff]
        %v239 = vld [vmem:[#allocation5 + $0x10] sm:$0xff]
        %v240 = vld [vmem:[#allocation5 + $0x18] sm:$0xff]
        %v241 = vld [vmem:[#allocation5 + $0x20] sm:$0xff]
        %v242 = vld [vmem:[#allocation5 + $0x28] sm:$0xff]
        %v243 = vld [vmem:[#allocation5 + $0x30] sm:$0xff]
        %v244 = vld [vmem:[#allocation5 + $0x38] sm:$0xff]
        %v245 = vld [vmem:[#allocation5 + $0x40] sm:$0xff]
        %v246 = vld [vmem:[#allocation5 + $0x48] sm:$0xff]
        %v247 = vld [vmem:[#allocation5 + $0x50] sm:$0xff]
        %v248 = vld [vmem:[#allocation5 + $0x58] sm:$0xff]
        %v249 = vld [vmem:[#allocation5 + $0x60] sm:$0xff]
        %v250 = vld [vmem:[#allocation5 + $0x68] sm:$0xff]
        %v251 = vld [vmem:[#allocation5 + $0x70] sm:$0xff]
        %v252 = vld [vmem:[#allocation5 + $0x78] sm:$0xff]
        %v253 = vld [vmem:[%s235] sm:$0x1]
        %v255 = vlaneseq
        %v256 = vshrl.u32 %v255, 7
        %v257 = vsub.s32 0, %v256
        %v258 = vrot.slane %v253, %v257
        %260 = vmatprep.subr.mxu0 0.0
        %261 = vmatpush1.msra.mxu0 %v252
        %262 = vmatprep.subr.mxu0 0.0
        %263 = vmatpush1.msra.mxu0 %v251
        %264 = vmatprep.subr.mxu0 0.0
        %265 = vmatpush1.msra.mxu0 %v250
        %266 = vmatprep.subr.mxu0 0.0
        %267 = vmatpush1.msra.mxu0 %v249
        %268 = vmatprep.subr.mxu0 0.0
        %269 = vmatpush1.msra.mxu0 %v248
        %270 = vmatprep.subr.mxu0 0.0
        %271 = vmatpush1.msra.mxu0 %v247
        %272 = vmatprep.subr.mxu0 0.0
        %273 = vmatpush1.msra.mxu0 %v246
        %274 = vmatprep.subr.mxu0 0.0
        %275 = vmatpush1.msra.mxu0 %v245
        %276 = vmatprep.subr.mxu0 0.0
        %277 = vmatpush1.msra.mxu0 %v244
        %278 = vmatprep.subr.mxu0 0.0
        %279 = vmatpush1.msra.mxu0 %v243
        %280 = vmatprep.subr.mxu0 0.0
        %281 = vmatpush1.msra.mxu0 %v242
        %282 = vmatprep.subr.mxu0 0.0
        %283 = vmatpush1.msra.mxu0 %v241
        %284 = vmatprep.subr.mxu0 0.0
        %285 = vmatpush1.msra.mxu0 %v240
        %286 = vmatprep.subr.mxu0 0.0
        %287 = vmatpush1.msra.mxu0 %v239
        %288 = vmatprep.subr.mxu0 0.0
        %289 = vmatpush1.msra.mxu0 %v238
        %290 = vmatprep.subr.mxu0 0.0
        %291 = vmatpush1.msra.mxu0 %v237
        %292 = vmatprep.subr.mxu0 0.0
        %293 = vmatpush2.msra.mxu0 0.0
        %294 = vmatprep.subr.mxu0 0.0
        %295 = vmatpush2.msra.mxu0 0.0
        %296 = vmatprep.subr.mxu0 0.0
        %297 = vmatpush2.msra.mxu0 0.0
        %298 = vmatprep.subr.mxu0 0.0
        %299 = vmatpush2.msra.mxu0 0.0
        %300 = vmatprep.subr.mxu0 0.0
        %301 = vmatpush2.msra.mxu0 0.0
        %302 = vmatprep.subr.mxu0 0.0
        %303 = vmatpush2.msra.mxu0 0.0
        %304 = vmatprep.subr.mxu0 0.0
        %305 = vmatpush2.msra.mxu0 0.0
        %306 = vmatprep.subr.mxu0 0.0
        %307 = vmatpush2.msra.mxu0 0.0
        %308 = vmatprep.subr.mxu0 0.0
        %309 = vmatpush2.msra.mxu0 0.0
        %310 = vmatprep.subr.mxu0 0.0
        %311 = vmatpush2.msra.mxu0 0.0
        %312 = vmatprep.subr.mxu0 0.0
        %313 = vmatpush2.msra.mxu0 0.0
        %314 = vmatprep.subr.mxu0 0.0
        %315 = vmatpush2.msra.mxu0 0.0
        %316 = vmatprep.subr.mxu0 0.0
        %317 = vmatpush2.msra.mxu0 0.0
        %318 = vmatprep.subr.mxu0 0.0
        %319 = vmatpush2.msra.mxu0 0.0
        %320 = vmatprep.subr.mxu0 0.0
        %321 = vmatpush2.msra.mxu0 0.0
        %322 = vmatprep.subr.mxu0 0.0
        %323 = vmatpush2.msra.mxu0 0.0
        %324 = vmatprep.mubr.f32.mxu0 0.0
        %325 = vmatmul.mubr.f32.gmra.mxu0 %v236
        %v326 = vpop.f32.mrf.mxu0
        %v327 = vadd.f32 %v258, %v326
        %v328 = vpop.f32.mrf.mxu0
        %329 = vdwg.mxu0
        %330 = vst [vmem:[%s232] sm:$0xff] %v327
        %s331 = sand.u32 %s121, 1
        %s332 = scalar_lea.sflag [#allocation4], %s331
        %s333 = sand.u32 %s121, 1
        %s334 = smul.addr %s333, 8
        %s335 = scalar_lea.vmem [#allocation7], %s334
        // Predicated region
        $region41: #{tpu_custom_call.1} parent=31 // pred_check
          %p336 = pneg %p131
        $region42: #{tpu_custom_call.1} parent=31 // pred_check_branch
          %338 = sbr.rel (%p336) target = $region44
        $region43: #{tpu_custom_call.1} parent=31 // pred_region
          %s340 = ssub.s32 128, 128
          %341 = vsyncadd %s332, %s340
          %s342 = sadd.s32 %s26, %s25
          %s343 = smul.addr %s342, 128
          %s344 = scalar_lea.hbm %s3, %s343
          %s346 = sshll.u32 %s335, 4
          %s347 = int_to_ptr.vmem [resolvable:$true] %s346
          %349 = dma.vmem_to_hbm [thread:$0]  %s347, 128, %s344, %s332
        $region44: #{tpu_custom_call.1} parent=31 // pred_fallthru
          _
      $region32: #{tpu_custom_call.1} parent=5 // pred_fallthru
        _
      %p350 = scmp.le.s32.totalorder 2, %s16
      // Predicated region
      $region45: #{tpu_custom_call.1} parent=5 // pred_check
        %p351 = pneg %p350
      $region46: #{tpu_custom_call.1} parent=5 // pred_check_branch
        %353 = sbr.rel (%p351) target = $region48
      $region47: #{tpu_custom_call.1} parent=5 // pred_region
        %s354 = ssub.s32 %s16, 2
        // Predicated region
        $region49: #{tpu_custom_call.1} parent=47 // pred_check
          %p355 = pneg %p137
        $region50: #{tpu_custom_call.1} parent=47 // pred_check_branch
          %357 = sbr.rel (%p355) target = $region52
        $region51: #{tpu_custom_call.1} parent=47 // pred_region
          %s358 = sand.u32 %s122, 1
          %s359 = scalar_lea.sflag [#allocation4], %s358
          %s360 = sand.u32 %s122, 1
          %s361 = smul.addr %s360, 8
          %s362 = scalar_lea.vmem [#allocation7], %s361
          %363 = dma.done %s359, 128
        $region52: #{tpu_custom_call.1} parent=47 // pred_fallthru
          _
      $region48: #{tpu_custom_call.1} parent=5 // pred_fallthru
        _
    $region6: #{tpu_custom_call.1} parent=1 // loop_footer
      %s20 = sadd.s32 1, %s16
    $region7: #{tpu_custom_call.1} parent=1 // loop_footer_branch
      %15 = sbr.rel target = $region3
    $region8: #{tpu_custom_call.1} parent=1 // loop_exit
      _
    %364 = vsyncpa [#allocation3], 1
    %s365 = scalar_lea.sflag [#allocation3], 1
    %366 = vsyncpa %s365, 1
    %367 = vsyncpa [#allocation6], 1
    %368 = vsyncpa [#allocation4], 1
    %s369 = scalar_lea.sflag [#allocation4], 1
    %370 = vsyncpa %s369, 1

</llo_original>
